<compile_context>
chip_gen: v6e
topology: v6e:2x2x1
jax: 0.10.0
libtpu: 0.0.40
codegen_flags: <defaults>
</compile_context>

<pallas_src>
import functools
import math

import jax
import jax.numpy as jnp
from jax.experimental import pallas as pl
from jax.experimental.pallas import tpu as pltpu


def _round_up(x, m):
    return ((x + m - 1) // m) * m


# ------------------------------ fused kernel ------------------------------- #

def _fused_cnn_kernel(x_ref, *refs, num_layers, patch_size):
    """All conv layers + ReLU + readout for one batch tile, fully in VMEM.

    x_ref : (n_pos1, TILE_B, ps*cin)  bf16  position-major, taps folded in lanes
    refs  : w_0                        bf16  (ps*cin, h)         (scale folded)
            w_1 ... w_{L-1}            bf16  (ps, h, h)          (scale folded)
            beta                       bf16  (h, out_dim)        (1/h folded)
            o                          f32   (TILE_B, out_dim)
    """
    w_refs = refs[:num_layers]
    beta_ref = refs[num_layers]
    o_ref = refs[num_layers + 1]

    n_pos, tb, _ = x_ref.shape
    h = beta_ref.shape[0]
    ps = patch_size

    # ---- layer 1: taps folded into K, all positions batched into M ----------
    # (n_pos, tb, ps*cin) -> (n_pos*tb, ps*cin): merges whole sublane tiles
    # (tb % 16 == 0), so the reshape is layout-free.
    x2 = x_ref[...].reshape(n_pos * tb, x_ref.shape[-1])
    acc = jnp.dot(x2, w_refs[0][...], preferred_element_type=jnp.float32)
    y = jnp.maximum(acc, 0.0).astype(jnp.bfloat16)          # (n_pos*tb, h)

    # ---- layers 2..L: one dot per tap, positions batched into M -------------
    for l in range(1, num_layers):
        n_out = n_pos // ps
        w_l = w_refs[l]                                      # (ps, h, h)
        # split the position axis off the sublane axis (layout-free: tb%16==0)
        y4 = y.reshape(n_out, ps, tb, h)
        acc = None
        for k in range(ps):
            yk = y4[:, k].reshape(n_out * tb, h)             # positions q*ps+k
            part = jnp.dot(yk, w_l[k], preferred_element_type=jnp.float32)
            acc = part if acc is None else acc + part
        y = jnp.maximum(acc, 0.0).astype(jnp.bfloat16)       # (n_out*tb, h)
        n_pos = n_out

    # After num_layers halvings the spatial extent is 1, so the mean over the
    # spatial dim is trivial.  Keep the general average for robustness.
    if n_pos > 1:
        yf = y.reshape(n_pos, tb, h).astype(jnp.float32)
        y = (jnp.sum(yf, axis=0) * (1.0 / n_pos)).astype(jnp.bfloat16)

    out = jnp.dot(y, beta_ref[...], preferred_element_type=jnp.float32)
    o_ref[...] = out.astype(o_ref.dtype)


# ------------------------------ forward wrapper ----------------------------- #

def cnn_forward(x, params, patch_size, num_layers, tile_batch=None):
    """CNN.forward.  x: (bs, input_channels, width >= patch_size**num_layers)."""
    conv_weights = params["conv_weights"]
    beta = params["beta"]

    bs, cin, width = x.shape
    ps = patch_size
    d = ps ** num_layers
    assert width >= d, (width, d)
    assert len(conv_weights) == num_layers
    h, out_dim = beta.shape
    n_pos1 = d // ps

    c_ins = [cin] + [h] * (num_layers - 1)
    scales = [1.0 / math.sqrt(c) for c in c_ins]

    # ---- batch tile (multiple of 16: safe for bf16 (16,128) sublane tiling) --
    if tile_batch is None:
        tile_batch = max(128, 2048 // max(d, 1))     # amortize per-step overhead
    tb = _round_up(max(int(tile_batch), 16), 16)
    tb = min(tb, _round_up(bs, 16))
    bs_pad = _round_up(bs, tb)
    num_tiles = bs_pad // tb

    # ---- one-time layout prep (tiny, outside the hot path) -------------------
    # input: (bs, cin, d) -> (n_pos1, bs_pad, ps*cin); taps folded into lanes:
    #   x_t[q, b, k*cin + c] = x[b, c, q*ps + k]
    x_d = x[:, :, :d].astype(jnp.float32).reshape(bs, cin, n_pos1, ps)
    x_t = jnp.transpose(x_d, (2, 0, 3, 1)).reshape(n_pos1, bs, ps * cin)
    if bs_pad != bs:
        x_t = jnp.pad(x_t, ((0, 0), (0, bs_pad - bs), (0, 0)))
    x_t = x_t.astype(jnp.bfloat16)

    # layer-1 weight: taps folded into K, 1/sqrt(cin) folded in (f32) pre-cast:
    #   w0_folded[k*cin + c, o] = w[o, c, 0, k] / sqrt(cin)
    w0 = conv_weights[0][:, :, 0, :].astype(jnp.float32)            # (h, cin, ps)
    w0_folded = (jnp.transpose(w0, (2, 1, 0)) * scales[0]
                 ).reshape(ps * cin, h).astype(jnp.bfloat16)

    w_stks = [w0_folded]
    for l in range(1, num_layers):
        wl = conv_weights[l][:, :, 0, :].astype(jnp.float32)        # (h, h, ps)
        w_stks.append((jnp.transpose(wl, (2, 1, 0)) * scales[l]).astype(jnp.bfloat16))

    # fold the 1/h readout divide into beta (f32 multiply, then bf16 cast)
    beta_b = (beta.astype(jnp.float32) * (1.0 / h)).astype(jnp.bfloat16)

    kernel = functools.partial(_fused_cnn_kernel,
                               num_layers=num_layers, patch_size=ps)

    in_specs = [pl.BlockSpec((n_pos1, tb, ps * cin), lambda i: (0, i, 0))]
    for w in w_stks:
        in_specs.append(pl.BlockSpec(w.shape, lambda i, _n=w.ndim: (0,) * _n))
    in_specs.append(pl.BlockSpec(beta_b.shape, lambda i: (0, 0)))

    flops = 2 * bs_pad * (
        n_pos1 * (ps * cin) * h
        + sum((d // ps ** (l + 1)) * ps * h * h for l in range(1, num_layers))
        + h * out_dim)
    bytes_accessed = (x_t.size * 2 + sum(w.size * 2 for w in w_stks)
                      + beta_b.size * 2 + bs_pad * out_dim * 4)

    out = pl.pallas_call(
        kernel,
        out_shape=jax.ShapeDtypeStruct((bs_pad, out_dim), jnp.float32),
        grid=(num_tiles,),
        in_specs=in_specs,
        out_specs=pl.BlockSpec((tb, out_dim), lambda i: (i, 0)),
        compiler_params=pltpu.CompilerParams(
            dimension_semantics=("parallel",),
            vmem_limit_bytes=32 * 1024 * 1024,
        ),
        cost_estimate=pl.CostEstimate(
            flops=flops, transcendentals=0, bytes_accessed=bytes_accessed),
    )(x_t, *w_stks, beta_b)

    return out[:bs]


# --------------------------------- params ----------------------------------- #

def init_params(key, input_channels, h, out_dim, num_layers, patch_size):
    keys = jax.random.split(key, num_layers + 1)
    conv_weights = []
    cin = input_channels
    for l in range(num_layers):
        w = jax.random.normal(keys[l], (h, cin, 1, patch_size), dtype=jnp.float32)
        conv_weights.append(w)
        cin = h
    beta = jax.random.normal(keys[-1], (h, out_dim), dtype=jnp.float32)
    return {"conv_weights": conv_weights, "beta": beta}


# ---------------------------- pure-JAX reference ----------------------------- #

def _reference_forward(x, params, patch_size, num_layers):
    d = patch_size ** num_layers
    y = x[..., :d]
    for w in params["conv_weights"]:
        bs, cin, dd = y.shape
        P = dd // patch_size
        yr = y.reshape(bs, cin, P, patch_size)
        y = jnp.einsum("bcpk,ock->bop", yr, w[:, :, 0, :]) / math.sqrt(cin)
        y = jnp.maximum(y, 0.0)
    y = y.mean(axis=-1).astype(jnp.float32)
    beta = params["beta"]
    return y @ beta / beta.shape[0]


# ----------------------------------- main ------------------------------------ #

if __name__ == "__main__":
    # d = patch_size ** num_layers = 8; extra spatial positions are truncated.
    input_channels, h, out_dim, num_layers, patch_size = 4, 32, 8, 3, 2
    bs, seq = 32, 16

    key = jax.random.PRNGKey(0)
    k_x, k_p = jax.random.split(key)
    x = jax.random.normal(k_x, (bs, input_channels, seq), dtype=jnp.float32)
    params = init_params(k_p, input_channels, h, out_dim, num_layers, patch_size)

    fwd = jax.jit(cnn_forward,
                  static_argnames=("patch_size", "num_layers", "tile_batch"))
    # tile_batch=16 -> grid=(2,): exercises batch tiling and keeps both v7x
    # TensorCores busy under dimension_semantics=("parallel",).
    out = fwd(x, params, patch_size=patch_size, num_layers=num_layers,
              tile_batch=16)
    out = jax.block_until_ready(out)

    ref = _reference_forward(x, params, patch_size, num_layers)
    assert out.shape == (bs, out_dim), out.shape
    # bf16 inputs / f32 accumulation vs. f32 reference -> loosened tolerance.
    assert jnp.allclose(out, ref, atol=3e-2, rtol=3e-2), (
        float(jnp.max(jnp.abs(out - ref))))

    print("KERNEL_OK")
</pallas_src>

<mosaic_0001>
module attributes {stable_mosaic.version = 11 : i64} {
  func.func @_fused_cnn_kernel(%arg0: i32, %arg1: memref<4x16x8xbf16, #tpu.memory_space<vmem>>, %arg2: memref<8x32xbf16, #tpu.memory_space<vmem>>, %arg3: memref<2x32x32xbf16, #tpu.memory_space<vmem>>, %arg4: memref<2x32x32xbf16, #tpu.memory_space<vmem>>, %arg5: memref<32x8xbf16, #tpu.memory_space<vmem>>, %arg6: memref<16x8xf32, #tpu.memory_space<vmem>>) attributes {dimension_semantics = [#tpu.dimension_semantics<parallel>], iteration_bounds = array<i64: 2>, scalar_prefetch = 0 : i64, scratch_operands = 0 : i64, tpu.core_type = #tpu.core_type<tc>, window_params = [{transform_indices = @transform_0, window_bounds = array<i64: 4, 16, 8>}, {pipeline_mode = #tpu.pipeline_mode<synchronous>, transform_indices = @transform_1, window_bounds = array<i64: 8, 32>}, {pipeline_mode = #tpu.pipeline_mode<synchronous>, transform_indices = @transform_2, window_bounds = array<i64: 2, 32, 32>}, {pipeline_mode = #tpu.pipeline_mode<synchronous>, transform_indices = @transform_3, window_bounds = array<i64: 2, 32, 32>}, {pipeline_mode = #tpu.pipeline_mode<synchronous>, transform_indices = @transform_4, window_bounds = array<i64: 32, 8>}, {transform_indices = @transform_5, window_bounds = array<i64: 16, 8>}]} {
    %c0 = arith.constant 0 : index
    %c0_0 = arith.constant 0 : index
    %c0_1 = arith.constant 0 : index
    %0 = vector.load %arg1[%c0, %c0_0, %c0_1] : memref<4x16x8xbf16, #tpu.memory_space<vmem>>, vector<4x16x8xbf16>
    %1 = vector.shape_cast %0 : vector<4x16x8xbf16> to vector<64x8xbf16>
    %c0_2 = arith.constant 0 : index
    %c0_3 = arith.constant 0 : index
    %2 = vector.load %arg2[%c0_2, %c0_3] : memref<8x32xbf16, #tpu.memory_space<vmem>>, vector<8x32xbf16>
    %cst = arith.constant dense<0.000000e+00> : vector<64x32xf32>
    %3 = tpu.matmul %1, %2, %cst {dimension_numbers = #tpu.dot_dimension_numbers<[1], [0], [0], [1], [0, 0, 1, 1], [], []>} : vector<64x8xbf16>, vector<8x32xbf16>, vector<64x32xf32> -> vector<64x32xf32>
    %cst_4 = arith.constant 0.000000e+00 : f32
    %4 = vector.broadcast %cst_4 : f32 to vector<64x32xf32>
    %5 = arith.maximumf %3, %4 : vector<64x32xf32>
    %6 = arith.truncf %5 : vector<64x32xf32> to vector<64x32xbf16>
    %7 = vector.shape_cast %6 : vector<64x32xbf16> to vector<2x2x16x32xbf16>
    %8 = vector.extract_strided_slice %7 {offsets = [0, 0, 0, 0], sizes = [2, 1, 16, 32], strides = [1, 1, 1, 1]} : vector<2x2x16x32xbf16> to vector<2x1x16x32xbf16>
    %9 = vector.shape_cast %8 : vector<2x1x16x32xbf16> to vector<2x16x32xbf16>
    %10 = vector.shape_cast %9 : vector<2x16x32xbf16> to vector<32x32xbf16>
    %c0_5 = arith.constant 0 : index
    %c0_6 = arith.constant 0 : index
    %c0_7 = arith.constant 0 : index
    %11 = vector.load %arg3[%c0_5, %c0_6, %c0_7] : memref<2x32x32xbf16, #tpu.memory_space<vmem>>, vector<1x32x32xbf16>
    %12 = vector.shape_cast %11 : vector<1x32x32xbf16> to vector<32x32xbf16>
    %cst_8 = arith.constant dense<0.000000e+00> : vector<32x32xf32>
    %13 = tpu.matmul %10, %12, %cst_8 {dimension_numbers = #tpu.dot_dimension_numbers<[1], [0], [0], [1], [0, 0, 1, 1], [], []>} : vector<32x32xbf16>, vector<32x32xbf16>, vector<32x32xf32> -> vector<32x32xf32>
    %14 = vector.extract_strided_slice %7 {offsets = [0, 1, 0, 0], sizes = [2, 1, 16, 32], strides = [1, 1, 1, 1]} : vector<2x2x16x32xbf16> to vector<2x1x16x32xbf16>
    %15 = vector.shape_cast %14 : vector<2x1x16x32xbf16> to vector<2x16x32xbf16>
    %16 = vector.shape_cast %15 : vector<2x16x32xbf16> to vector<32x32xbf16>
    %c1 = arith.constant 1 : index
    %c0_9 = arith.constant 0 : index
    %c0_10 = arith.constant 0 : index
    %17 = vector.load %arg3[%c1, %c0_9, %c0_10] : memref<2x32x32xbf16, #tpu.memory_space<vmem>>, vector<1x32x32xbf16>
    %18 = vector.shape_cast %17 : vector<1x32x32xbf16> to vector<32x32xbf16>
    %cst_11 = arith.constant dense<0.000000e+00> : vector<32x32xf32>
    %19 = tpu.matmul %16, %18, %cst_11 {dimension_numbers = #tpu.dot_dimension_numbers<[1], [0], [0], [1], [0, 0, 1, 1], [], []>} : vector<32x32xbf16>, vector<32x32xbf16>, vector<32x32xf32> -> vector<32x32xf32>
    %20 = arith.addf %13, %19 : vector<32x32xf32>
    %cst_12 = arith.constant 0.000000e+00 : f32
    %21 = vector.broadcast %cst_12 : f32 to vector<32x32xf32>
    %22 = arith.maximumf %20, %21 : vector<32x32xf32>
    %23 = arith.truncf %22 : vector<32x32xf32> to vector<32x32xbf16>
    %24 = vector.shape_cast %23 : vector<32x32xbf16> to vector<1x2x16x32xbf16>
    %25 = vector.extract_strided_slice %24 {offsets = [0, 0, 0, 0], sizes = [1, 1, 16, 32], strides = [1, 1, 1, 1]} : vector<1x2x16x32xbf16> to vector<1x1x16x32xbf16>
    %26 = vector.shape_cast %25 : vector<1x1x16x32xbf16> to vector<1x16x32xbf16>
    %27 = vector.shape_cast %26 : vector<1x16x32xbf16> to vector<16x32xbf16>
    %c0_13 = arith.constant 0 : index
    %c0_14 = arith.constant 0 : index
    %c0_15 = arith.constant 0 : index
    %28 = vector.load %arg4[%c0_13, %c0_14, %c0_15] : memref<2x32x32xbf16, #tpu.memory_space<vmem>>, vector<1x32x32xbf16>
    %29 = vector.shape_cast %28 : vector<1x32x32xbf16> to vector<32x32xbf16>
    %cst_16 = arith.constant dense<0.000000e+00> : vector<16x32xf32>
    %30 = tpu.matmul %27, %29, %cst_16 {dimension_numbers = #tpu.dot_dimension_numbers<[1], [0], [0], [1], [0, 0, 1, 1], [], []>} : vector<16x32xbf16>, vector<32x32xbf16>, vector<16x32xf32> -> vector<16x32xf32>
    %31 = vector.extract_strided_slice %24 {offsets = [0, 1, 0, 0], sizes = [1, 1, 16, 32], strides = [1, 1, 1, 1]} : vector<1x2x16x32xbf16> to vector<1x1x16x32xbf16>
    %32 = vector.shape_cast %31 : vector<1x1x16x32xbf16> to vector<1x16x32xbf16>
    %33 = vector.shape_cast %32 : vector<1x16x32xbf16> to vector<16x32xbf16>
    %c1_17 = arith.constant 1 : index
    %c0_18 = arith.constant 0 : index
    %c0_19 = arith.constant 0 : index
    %34 = vector.load %arg4[%c1_17, %c0_18, %c0_19] : memref<2x32x32xbf16, #tpu.memory_space<vmem>>, vector<1x32x32xbf16>
    %35 = vector.shape_cast %34 : vector<1x32x32xbf16> to vector<32x32xbf16>
    %cst_20 = arith.constant dense<0.000000e+00> : vector<16x32xf32>
    %36 = tpu.matmul %33, %35, %cst_20 {dimension_numbers = #tpu.dot_dimension_numbers<[1], [0], [0], [1], [0, 0, 1, 1], [], []>} : vector<16x32xbf16>, vector<32x32xbf16>, vector<16x32xf32> -> vector<16x32xf32>
    %37 = arith.addf %30, %36 : vector<16x32xf32>
    %cst_21 = arith.constant 0.000000e+00 : f32
    %38 = vector.broadcast %cst_21 : f32 to vector<16x32xf32>
    %39 = arith.maximumf %37, %38 : vector<16x32xf32>
    %40 = arith.truncf %39 : vector<16x32xf32> to vector<16x32xbf16>
    %c0_22 = arith.constant 0 : index
    %c0_23 = arith.constant 0 : index
    %41 = vector.load %arg5[%c0_22, %c0_23] : memref<32x8xbf16, #tpu.memory_space<vmem>>, vector<32x8xbf16>
    %cst_24 = arith.constant dense<0.000000e+00> : vector<16x8xf32>
    %42 = tpu.matmul %40, %41, %cst_24 {dimension_numbers = #tpu.dot_dimension_numbers<[1], [0], [0], [1], [0, 0, 1, 1], [], []>} : vector<16x32xbf16>, vector<32x8xbf16>, vector<16x8xf32> -> vector<16x8xf32>
    %c0_25 = arith.constant 0 : index
    %c0_26 = arith.constant 0 : index
    %43 = vector.load %arg6[%c0_25, %c0_26] : memref<16x8xf32, #tpu.memory_space<vmem>>, vector<16x8xf32>
    tpu.vector_store %arg6[%c0_25, %c0_26], %42 {strides = array<i32>} : memref<16x8xf32, #tpu.memory_space<vmem>>, vector<16x8xf32>,
    return
  }
  func.func @transform_0(%arg0: i32) -> (i32, i32, i32) {
    %c0_i32 = arith.constant 0 : i32
    %c0_i32_0 = arith.constant 0 : i32
    %c0_i32_1 = arith.constant 0 : i32
    return %c0_i32, %arg0, %c0_i32_0 : i32, i32, i32
  }
  func.func @transform_1(%arg0: i32) -> (i32, i32) {
    %c0_i32 = arith.constant 0 : i32
    %c0_i32_0 = arith.constant 0 : i32
    %c0_i32_1 = arith.constant 0 : i32
    return %c0_i32, %c0_i32_0 : i32, i32
  }
  func.func @transform_2(%arg0: i32) -> (i32, i32, i32) {
    %c0_i32 = arith.constant 0 : i32
    %c0_i32_0 = arith.constant 0 : i32
    %c0_i32_1 = arith.constant 0 : i32
    %c0_i32_2 = arith.constant 0 : i32
    return %c0_i32, %c0_i32_0, %c0_i32_1 : i32, i32, i32
  }
  func.func @transform_3(%arg0: i32) -> (i32, i32, i32) {
    %c0_i32 = arith.constant 0 : i32
    %c0_i32_0 = arith.constant 0 : i32
    %c0_i32_1 = arith.constant 0 : i32
    %c0_i32_2 = arith.constant 0 : i32
    return %c0_i32, %c0_i32_0, %c0_i32_1 : i32, i32, i32
  }
  func.func @transform_4(%arg0: i32) -> (i32, i32) {
    %c0_i32 = arith.constant 0 : i32
    %c0_i32_0 = arith.constant 0 : i32
    %c0_i32_1 = arith.constant 0 : i32
    return %c0_i32, %c0_i32_0 : i32, i32
  }
  func.func @transform_5(%arg0: i32) -> (i32, i32) {
    %c0_i32 = arith.constant 0 : i32
    %c0_i32_0 = arith.constant 0 : i32
    return %arg0, %c0_i32 : i32, i32
  }
}

</mosaic_0001>

<llo_original>
// kernel: cnn_forward.1
$region0: #{cnn_forward.1}
  #allocation0 [shape = 'u32[]', space=smem, size = 0x4, offset = 0x4, fixed_abs, tag = 'smem constant byte address 0x4 - core index']
  #allocation1 [shape = 'u32[144,128]{1,0:T(1,128)}', space=vmem, size = 0x12000, scoped, tag = 'internal scratch']
  %s0 = inlined_call_operand.vmem [shape: bf16[4,32,8], index: 0, kind: input, shape index: {}]
  %s1 = inlined_call_operand.vmem [shape: bf16[8,32], index: 1, kind: input, shape index: {}]
  %s2 = inlined_call_operand.vmem [shape: bf16[2,32,32], index: 2, kind: input, shape index: {}]
  %s3 = inlined_call_operand.vmem [shape: bf16[2,32,32], index: 3, kind: input, shape index: {}]
  %s4 = inlined_call_operand.vmem [shape: bf16[32,8], index: 4, kind: input, shape index: {}]
  %s5 = inlined_call_operand.vmem [shape: f32[32,8], index: 5, kind: output, shape index: {}]
  %s6 = sld [smem:[#allocation0]]
  $region94: #{cnn_forward.1} parent=0
    _
  %s8 = ssub.s32 1, %s6
  %s9 = scalar_select 0, %s8, %s6
  $region1: #{cnn_forward.1} parent=0
    #allocation2 [shape = 'u8[32768]{0}', space=vmem, size = 0x8000, scoped, tag = 'input window, operand 0']
    loop: start=0, step=1, limit=4
    $region2: #{cnn_forward.1} parent=1 // loop_pre_header
      _
    $region3: #{cnn_forward.1} parent=1 // loop_header
      %s11 = sphi 0, %s15
      %p12 = scmp.ge.s32.totalorder %s11, 4
      %s21 = sphi 0, %s23
      %s24 = sphi 0, %s21
      %s25 = sphi 0, %s24
      %s41 = sphi 0, %s25
      %s45 = sphi 0, %s45
      %s47 = sphi 0, %s45
      %s48 = sphi 0, %s47
      %s62 = sphi 0, %s48
      %s66 = sphi 0, %s66
      %s68 = sphi 0, %s66
      %s69 = sphi 0, %s68
      %s83 = sphi 0, %s69
      %s87 = sphi 0, %s87
      %s89 = sphi 0, %s87
      %s90 = sphi 0, %s89
      %s104 = sphi 0, %s90
      %s108 = sphi 0, %s108
      %s110 = sphi 0, %s108
      %s111 = sphi 0, %s110
      %s125 = sphi 0, %s111
      %s131 = sphi 0, %s133
      %s134 = sphi 0, %s131
      %s135 = sphi 0, %s134
      %s151 = sphi 0, %s135
    $region4: #{cnn_forward.1} parent=1 // loop_header_branch
      %14 = sbr.rel (%p12) target = $region8
    $region5: #{cnn_forward.1} parent=1 // loop_body
      %s16 = ssub.s32 %s11, 1
      %s17 = ssub.s32 %s11, 2
      %s18 = sadd.s32 %s11, 1
      %s19 = ssub.s32 %s11, %s18
      %p20 = scmp.eq.s32.totalorder %s19, 0
      %s22 = sadd.s32 %s21, 1
      %s23 = scalar_select %p20, %s21, %s22
      %p26 = pneg %p20
      %p27 = scmp.eq.s32.totalorder %s11, 1
      %p28 = por %p26, %p27
      %p29 = scmp.ne.s32.totalorder %s21, %s24
      %p30 = scmp.eq.s32.totalorder %s11, 0
      %p31 = por %p29, %p30
      %p32 = scmp.ne.s32.totalorder %s21, %s24
      %p33 = scmp.eq.s32.totalorder %s16, 1
      %p34 = por %p32, %p33
      %p35 = scmp.ne.s32.totalorder %s24, %s25
      %p36 = scmp.eq.s32.totalorder %s16, 0
      %p37 = por %p35, %p36
      %p38 = scmp.ne.s32.totalorder %s24, %s25
      %p39 = scmp.eq.s32.totalorder %s17, 1
      %p40 = por %p38, %p39
      %p42 = scmp.ne.s32.totalorder %s25, %s41
      %p43 = scmp.eq.s32.totalorder %s17, 0
      %p44 = por %p42, %p43
      %s46 = sadd.s32 %s45, 1
      %p49 = scmp.eq.s32.totalorder %s11, 1
      %p50 = scmp.ne.s32.totalorder %s45, %s47
      %p51 = scmp.eq.s32.totalorder %s11, 0
      %p52 = por %p50, %p51
      %p53 = scmp.ne.s32.totalorder %s45, %s47
      %p54 = scmp.eq.s32.totalorder %s16, 1
      %p55 = por %p53, %p54
      %p56 = scmp.ne.s32.totalorder %s47, %s48
      %p57 = scmp.eq.s32.totalorder %s16, 0
      %p58 = por %p56, %p57
      %p59 = scmp.ne.s32.totalorder %s47, %s48
      %p60 = scmp.eq.s32.totalorder %s17, 1
      %p61 = por %p59, %p60
      %p63 = scmp.ne.s32.totalorder %s48, %s62
      %p64 = scmp.eq.s32.totalorder %s17, 0
      %p65 = por %p63, %p64
      %s67 = sadd.s32 %s66, 1
      %p70 = scmp.eq.s32.totalorder %s11, 1
      %p71 = scmp.ne.s32.totalorder %s66, %s68
      %p72 = scmp.eq.s32.totalorder %s11, 0
      %p73 = por %p71, %p72
      %p74 = scmp.ne.s32.totalorder %s66, %s68
      %p75 = scmp.eq.s32.totalorder %s16, 1
      %p76 = por %p74, %p75
      %p77 = scmp.ne.s32.totalorder %s68, %s69
      %p78 = scmp.eq.s32.totalorder %s16, 0
      %p79 = por %p77, %p78
      %p80 = scmp.ne.s32.totalorder %s68, %s69
      %p81 = scmp.eq.s32.totalorder %s17, 1
      %p82 = por %p80, %p81
      %p84 = scmp.ne.s32.totalorder %s69, %s83
      %p85 = scmp.eq.s32.totalorder %s17, 0
      %p86 = por %p84, %p85
      %s88 = sadd.s32 %s87, 1
      %p91 = scmp.eq.s32.totalorder %s11, 1
      %p92 = scmp.ne.s32.totalorder %s87, %s89
      %p93 = scmp.eq.s32.totalorder %s11, 0
      %p94 = por %p92, %p93
      %p95 = scmp.ne.s32.totalorder %s87, %s89
      %p96 = scmp.eq.s32.totalorder %s16, 1
      %p97 = por %p95, %p96
      %p98 = scmp.ne.s32.totalorder %s89, %s90
      %p99 = scmp.eq.s32.totalorder %s16, 0
      %p100 = por %p98, %p99
      %p101 = scmp.ne.s32.totalorder %s89, %s90
      %p102 = scmp.eq.s32.totalorder %s17, 1
      %p103 = por %p101, %p102
      %p105 = scmp.ne.s32.totalorder %s90, %s104
      %p106 = scmp.eq.s32.totalorder %s17, 0
      %p107 = por %p105, %p106
      %s109 = sadd.s32 %s108, 1
      %p112 = scmp.eq.s32.totalorder %s11, 1
      %p113 = scmp.ne.s32.totalorder %s108, %s110
      %p114 = scmp.eq.s32.totalorder %s11, 0
      %p115 = por %p113, %p114
      %p116 = scmp.ne.s32.totalorder %s108, %s110
      %p117 = scmp.eq.s32.totalorder %s16, 1
      %p118 = por %p116, %p117
      %p119 = scmp.ne.s32.totalorder %s110, %s111
      %p120 = scmp.eq.s32.totalorder %s16, 0
      %p121 = por %p119, %p120
      %p122 = scmp.ne.s32.totalorder %s110, %s111
      %p123 = scmp.eq.s32.totalorder %s17, 1
      %p124 = por %p122, %p123
      %p126 = scmp.ne.s32.totalorder %s111, %s125
      %p127 = scmp.eq.s32.totalorder %s17, 0
      %p128 = por %p126, %p127
      %s129 = ssub.s32 %s11, %s18
      %p130 = scmp.eq.s32.totalorder %s129, 0
      %s132 = sadd.s32 %s131, 1
      %s133 = scalar_select %p130, %s131, %s132
      %p136 = pneg %p130
      %p137 = scmp.eq.s32.totalorder %s11, 1
      %p138 = por %p136, %p137
      %p139 = scmp.ne.s32.totalorder %s131, %s134
      %p140 = scmp.eq.s32.totalorder %s11, 0
      %p141 = por %p139, %p140
      %p142 = scmp.ne.s32.totalorder %s131, %s134
      %p143 = scmp.eq.s32.totalorder %s16, 1
      %p144 = por %p142, %p143
      %p145 = scmp.ne.s32.totalorder %s134, %s135
      %p146 = scmp.eq.s32.totalorder %s16, 0
      %p147 = por %p145, %p146
      %p148 = scmp.ne.s32.totalorder %s134, %s135
      %p149 = scmp.eq.s32.totalorder %s17, 1
      %p150 = por %p148, %p149
      %p152 = scmp.ne.s32.totalorder %s135, %s151
      %p153 = scmp.eq.s32.totalorder %s17, 0
      %p154 = por %p152, %p153
      %p155 = scmp.le.s32.totalorder 1, %s11
      %p156 = scmp.lt.s32.totalorder %s11, 3
      %p157 = pnand %p155, %p156
      %p158 = pneg %p157
      // Predicated region
      $region9: #{cnn_forward.1} parent=5 // pred_check
        _
      $region10: #{cnn_forward.1} parent=5 // pred_check_branch
        %160 = sbr.rel (%p157) target = $region12
      $region11: #{cnn_forward.1} parent=5 // pred_region
        %s161 = ssub.s32 %s11, 1
        // Predicated region
        $region13: #{cnn_forward.1} parent=11 // pred_check
          %p162 = pneg %p58
        $region14: #{cnn_forward.1} parent=11 // pred_check_branch
          %164 = sbr.rel (%p162) target = $region16
        $region15: #{cnn_forward.1} parent=11 // pred_region
          _
        $region16: #{cnn_forward.1} parent=11 // pred_fallthru
          _
        // Predicated region
        $region17: #{cnn_forward.1} parent=11 // pred_check
          %p165 = pneg %p79
        $region18: #{cnn_forward.1} parent=11 // pred_check_branch
          %167 = sbr.rel (%p165) target = $region20
        $region19: #{cnn_forward.1} parent=11 // pred_region
          _
        $region20: #{cnn_forward.1} parent=11 // pred_fallthru
          _
        // Predicated region
        $region21: #{cnn_forward.1} parent=11 // pred_check
          %p168 = pneg %p100
        $region22: #{cnn_forward.1} parent=11 // pred_check_branch
          %170 = sbr.rel (%p168) target = $region24
        $region23: #{cnn_forward.1} parent=11 // pred_region
          _
        $region24: #{cnn_forward.1} parent=11 // pred_fallthru
          _
        // Predicated region
        $region25: #{cnn_forward.1} parent=11 // pred_check
          %p171 = pneg %p121
        $region26: #{cnn_forward.1} parent=11 // pred_check_branch
          %173 = sbr.rel (%p171) target = $region28
        $region27: #{cnn_forward.1} parent=11 // pred_region
          _
        $region28: #{cnn_forward.1} parent=11 // pred_fallthru
          _
      $region12: #{cnn_forward.1} parent=5 // pred_fallthru
        _
      %p174 = scmp.lt.s32.totalorder %s11, 2
      // Predicated region
      $region29: #{cnn_forward.1} parent=5 // pred_check
        %p175 = pneg %p174
      $region30: #{cnn_forward.1} parent=5 // pred_check_branch
        %177 = sbr.rel (%p175) target = $region32
      $region31: #{cnn_forward.1} parent=5 // pred_region
        // Predicated region
        $region33: #{cnn_forward.1} parent=31 // pred_check
          %p178 = pneg %p31
        $region34: #{cnn_forward.1} parent=31 // pred_check_branch
          %180 = sbr.rel (%p178) target = $region36
        $region35: #{cnn_forward.1} parent=31 // pred_region
          %s181 = sand.u32 %s21, 1
          %s182 = sand.u32 %s21, 1
          %s183 = smul.addr %s182, 32
          %s184 = scalar_lea.vmem [#allocation2], %s183
          %s185 = smul.u32 2, %s11
          %s186 = smul.addr %s185, 4
          %s187 = scalar_lea.vmem %s0, %s186
          // Predicated region
          $region37: #{cnn_forward.1} parent=35 // pred_check
            _
          $region38: #{cnn_forward.1} parent=35 // pred_check_branch
            %189 = sbr.rel (0) target = $region40
          $region39: #{cnn_forward.1} parent=35 // pred_region
            // Predicated region
            $region41: #{cnn_forward.1} parent=39 // pred_check
              _
            $region42: #{cnn_forward.1} parent=39 // pred_check_branch
              %191 = sbr.rel target = $region44
            $region43: #{cnn_forward.1} parent=39 // pred_region
              // Predicated region
              $region56: #{cnn_forward.1} parent=43 // pred_check
                _
              $region57: #{cnn_forward.1} parent=43 // pred_check_branch
                %221 = sbr.rel (0) target = $region59
              $region58: #{cnn_forward.1} parent=43 // pred_region
                loop: start=0, step=1, limit=1
                $region60: #{cnn_forward.1} parent=58 // loop_pre_header
                  _
                $region61: #{cnn_forward.1} parent=58 // loop_header
                  %s223 = sphi 0, %s227
                  %p224 = scmp.ge.s32.totalorder %s223, 1
                  %s228 = sphi %s187, %s187
                  %s229 = sphi %s184, %s184
                $region62: #{cnn_forward.1} parent=58 // loop_header_branch
                  %226 = sbr.rel (%p224) target = $region66
                $region63: #{cnn_forward.1} parent=58 // loop_body
                  _
                $region64: #{cnn_forward.1} parent=58 // loop_footer
                  %s227 = sadd.s32 1, %s223
                $region65: #{cnn_forward.1} parent=58 // loop_footer_branch
                  %222 = sbr.rel target = $region61
                $region66: #{cnn_forward.1} parent=58 // loop_exit
                  _
                %s231 = ssub.s32 16, 1
                loop: start=0, step=1, limit=1
                $region67: #{cnn_forward.1} parent=58 // loop_pre_header
                  _
                $region68: #{cnn_forward.1} parent=58 // loop_header
                  %s233 = sphi 0, %s237
                  %p234 = scmp.ge.s32.totalorder %s233, 1
                  %s238 = sphi %s187, %s187
                  %s239 = sphi %s184, %s184
                $region69: #{cnn_forward.1} parent=58 // loop_header_branch
                  %236 = sbr.rel (%p234) target = $region73
                $region70: #{cnn_forward.1} parent=58 // loop_body
                  %v240 = vld [vmem:[%s238] sm:%s231]
                  %241 = vst [vmem:[%s239] sm:%s231] %v240
                  %v242 = vld [vmem:[%s238 + $0x4] sm:%s231]
                  %243 = vst [vmem:[%s239 + $0x4] sm:%s231] %v242
                  %v244 = vld [vmem:[%s238 + $0x10] sm:%s231]
                  %245 = vst [vmem:[%s239 + $0x8] sm:%s231] %v244
                  %v246 = vld [vmem:[%s238 + $0x14] sm:%s231]
                  %247 = vst [vmem:[%s239 + $0xc] sm:%s231] %v246
                  %v248 = vld [vmem:[%s238 + $0x20] sm:%s231]
                  %249 = vst [vmem:[%s239 + $0x10] sm:%s231] %v248
                  %v250 = vld [vmem:[%s238 + $0x24] sm:%s231]
                  %251 = vst [vmem:[%s239 + $0x14] sm:%s231] %v250
                  %v252 = vld [vmem:[%s238 + $0x30] sm:%s231]
                  %253 = vst [vmem:[%s239 + $0x18] sm:%s231] %v252
                  %v254 = vld [vmem:[%s238 + $0x34] sm:%s231]
                  %255 = vst [vmem:[%s239 + $0x1c] sm:%s231] %v254
                $region71: #{cnn_forward.1} parent=58 // loop_footer
                  %s237 = sadd.s32 1, %s233
                $region72: #{cnn_forward.1} parent=58 // loop_footer_branch
                  %232 = sbr.rel target = $region68
                $region73: #{cnn_forward.1} parent=58 // loop_exit
                  _
              $region59: #{cnn_forward.1} parent=43 // pred_fallthru
                _
            $region44: #{cnn_forward.1} parent=39 // pred_fallthru
              _
            // Predicated region
            $region45: #{cnn_forward.1} parent=39 // pred_check
              _
            $region46: #{cnn_forward.1} parent=39 // pred_check_branch
              %193 = sbr.rel (0) target = $region48
            $region47: #{cnn_forward.1} parent=39 // pred_region
              %s195 = ssub.s32 16, 1
              loop: start=0, step=1, limit=1
              $region49: #{cnn_forward.1} parent=47 // loop_pre_header
                _
              $region50: #{cnn_forward.1} parent=47 // loop_header
                %s197 = sphi 0, %s201
                %p198 = scmp.ge.s32.totalorder %s197, 1
                %s202 = sphi %s187, %s187
                %s203 = sphi %s184, %s184
              $region51: #{cnn_forward.1} parent=47 // loop_header_branch
                %200 = sbr.rel (%p198) target = $region55
              $region52: #{cnn_forward.1} parent=47 // loop_body
                %v204 = vld [vmem:[%s202] sm:%s195]
                %205 = vst [vmem:[%s203] sm:%s195] %v204
                %v206 = vld [vmem:[%s202 + $0x4] sm:%s195]
                %207 = vst [vmem:[%s203 + $0x4] sm:%s195] %v206
                %v208 = vld [vmem:[%s202 + $0x10] sm:%s195]
                %209 = vst [vmem:[%s203 + $0x8] sm:%s195] %v208
                %v210 = vld [vmem:[%s202 + $0x14] sm:%s195]
                %211 = vst [vmem:[%s203 + $0xc] sm:%s195] %v210
                %v212 = vld [vmem:[%s202 + $0x20] sm:%s195]
                %213 = vst [vmem:[%s203 + $0x10] sm:%s195] %v212
                %v214 = vld [vmem:[%s202 + $0x24] sm:%s195]
                %215 = vst [vmem:[%s203 + $0x14] sm:%s195] %v214
                %v216 = vld [vmem:[%s202 + $0x30] sm:%s195]
                %217 = vst [vmem:[%s203 + $0x18] sm:%s195] %v216
                %v218 = vld [vmem:[%s202 + $0x34] sm:%s195]
                %219 = vst [vmem:[%s203 + $0x1c] sm:%s195] %v218
              $region53: #{cnn_forward.1} parent=47 // loop_footer
                %s201 = sadd.s32 1, %s197
              $region54: #{cnn_forward.1} parent=47 // loop_footer_branch
                %196 = sbr.rel target = $region50
              $region55: #{cnn_forward.1} parent=47 // loop_exit
                _
            $region48: #{cnn_forward.1} parent=39 // pred_fallthru
              _
          $region40: #{cnn_forward.1} parent=35 // pred_fallthru
            _
          %256 = vnop
        $region36: #{cnn_forward.1} parent=31 // pred_fallthru
          _
      $region32: #{cnn_forward.1} parent=5 // pred_fallthru
        _
      %p257 = scmp.le.s32.totalorder 1, %s11
      %p258 = scmp.lt.s32.totalorder %s11, 3
      %p259 = pnand %p257, %p258
      %p260 = pneg %p259
      // Predicated region
      $region74: #{cnn_forward.1} parent=5 // pred_check
        _
      $region75: #{cnn_forward.1} parent=5 // pred_check_branch
        %262 = sbr.rel (%p259) target = $region77
      $region76: #{cnn_forward.1} parent=5 // pred_region
        %s263 = ssub.s32 %s11, 1
        %s264 = sand.u32 %s24, 1
        %s265 = sand.u32 %s24, 1
        %s266 = smul.addr %s265, 32
        %s267 = scalar_lea.vmem [#allocation2], %s266
        // Predicated region
        $region78: #{cnn_forward.1} parent=76 // pred_check
          %p268 = pneg %p37
        $region79: #{cnn_forward.1} parent=76 // pred_check_branch
          %270 = sbr.rel (%p268) target = $region81
        $region80: #{cnn_forward.1} parent=76 // pred_region
          _
        $region81: #{cnn_forward.1} parent=76 // pred_fallthru
          _
        %s271 = sand.u32 %s24, 1
        %s272 = sand.u32 %s24, 1
        %s273 = smul.addr %s272, 32
        %s274 = scalar_lea.vmem [#allocation2], %s273
        %p275 = pneg %p37
        %p276 = pneg %p34
        %p277 = pneg %p58
        %p278 = pneg %p55
        %p279 = pneg %p79
        %p280 = pneg %p76
        %p281 = pneg %p100
        %p282 = pneg %p97
        %p283 = pneg %p121
        %p284 = pneg %p118
        %p285 = pneg %p147
        %p286 = pneg %p144
        %s287 = smul.u32 2, %s16
        %p288 = scmp.lt.s32.totalorder %s287, 3
        %s289 = scalar_select %p288, %s287, 3
        %s290 = smul.addr %s289, 8
        %s291 = scalar_lea.vmem %s5, %s290
        %s292 = smul.u32 2, %s16
        %s293 = smul.u32 2, %s16
        %p294 = scmp.lt.s32.totalorder %s293, 3
        %s295 = scalar_select %p294, %s293, 3
        %s296 = smul.addr %s295, 8
        %s297 = scalar_lea.vmem %s5, %s296
        %s298 = smul.u32 2, %s16
        %v300 = vld [vmem:[%s267] sm:$0xf]
        %v301 = vld [vmem:[%s267 + $0x4] sm:$0xf]
        %v302 = vld [vmem:[%s267 + $0x8] sm:$0xf]
        %v303 = vld [vmem:[%s267 + $0xc] sm:$0xf]
        %v304 = vld [vmem:[%s267 + $0x10] sm:$0xf]
        %v305 = vld [vmem:[%s267 + $0x14] sm:$0xf]
        %v306 = vld [vmem:[%s267 + $0x18] sm:$0xf]
        %v307 = vld [vmem:[%s267 + $0x1c] sm:$0xf]
        %v308 = vld [vmem:[%s1] sm:$0xf]
        %v317 = vunpack.c.l.b16 %v300
        %v318 = vunpack.c.l.b16 %v301
        %v319 = vunpack.c.l.b16 %v302
        %v320 = vunpack.c.l.b16 %v303
        %v321 = vunpack.c.l.b16 %v304
        %v322 = vunpack.c.l.b16 %v305
        %v323 = vunpack.c.l.b16 %v306
        %v324 = vunpack.c.l.b16 %v307
        %v325 = vpack.c.b16 %v318, %v317
        %v326 = vpack.c.b16 %v320, %v319
        %v327 = vpack.c.b16 %v322, %v321
        %v328 = vpack.c.b16 %v324, %v323
        %vm329 = vcmask 64512
        %v331 = vsel %vm329, %v325, 0
        %v334 = vsel %vm329, %v326, 0
        %v337 = vsel %vm329, %v327, 0
        %v340 = vsel %vm329, %v328, 0
        %vm342 = vcmask 1043456
        %v344 = vsel %vm342, %v308, 0
        %346 = vmatprep.subr.bf16.mxu0 0
        %347 = vmatpush1.bf16.msra.mxu0 0
        %348 = vmatprep.subr.bf16.mxu0 0
        %349 = vmatpush1.bf16.msra.mxu0 0
        %350 = vmatprep.subr.bf16.mxu0 0
        %351 = vmatpush1.bf16.msra.mxu0 0
        %352 = vmatprep.subr.bf16.mxu0 0
        %353 = vmatpush1.bf16.msra.mxu0 0
        %354 = vmatprep.subr.bf16.mxu0 0
        %355 = vmatpush1.bf16.msra.mxu0 0
        %356 = vmatprep.subr.bf16.mxu0 0
        %357 = vmatpush1.bf16.msra.mxu0 0
        %358 = vmatprep.subr.bf16.mxu0 0
        %359 = vmatpush1.bf16.msra.mxu0 0
        %360 = vmatprep.subr.bf16.mxu0 0
        %361 = vmatpush1.bf16.msra.mxu0 %v344
        %362 = vmatprep.subr.bf16.mxu0 0
        %363 = vmatpush2.bf16.msra.mxu0 0
        %364 = vmatprep.subr.bf16.mxu0 0
        %365 = vmatpush2.bf16.msra.mxu0 0
        %366 = vmatprep.subr.bf16.mxu0 0
        %367 = vmatpush2.bf16.msra.mxu0 0
        %368 = vmatprep.subr.bf16.mxu0 0
        %369 = vmatpush2.bf16.msra.mxu0 0
        %370 = vmatprep.subr.bf16.mxu0 0
        %371 = vmatpush2.bf16.msra.mxu0 0
        %372 = vmatprep.subr.bf16.mxu0 0
        %373 = vmatpush2.bf16.msra.mxu0 0
        %374 = vmatprep.subr.bf16.mxu0 0
        %375 = vmatpush2.bf16.msra.mxu0 0
        %376 = vmatprep.subr.bf16.mxu0 0
        %377 = vmatpush2.bf16.msra.mxu0 0
        %378 = vmatprep.mubr.bf16.mxu0 0
        %379 = vmatmul.mubr.bf16.gmra.mxu0 %v331
        %v380 = vpop.f32.mrf.mxu0
        %v381 = vadd.f32 0.0, %v380
        %v382 = vpop.f32.mrf.mxu0
        %v383 = vpop.f32.mrf.mxu0
        %v384 = vadd.f32 0.0, %v383
        %v385 = vpop.f32.mrf.mxu0
        %386 = vmatprep.mubr.bf16.mxu0 0
        %387 = vmatmul.mubr.bf16.gmra.mxu0 %v334
        %v388 = vpop.f32.mrf.mxu0
        %v389 = vadd.f32 0.0, %v388
        %v390 = vpop.f32.mrf.mxu0
        %v391 = vpop.f32.mrf.mxu0
        %v392 = vadd.f32 0.0, %v391
        %v393 = vpop.f32.mrf.mxu0
        %394 = vmatprep.mubr.bf16.mxu0 0
        %395 = vmatmul.mubr.bf16.gmra.mxu0 %v337
        %v396 = vpop.f32.mrf.mxu0
        %v397 = vadd.f32 0.0, %v396
        %v398 = vpop.f32.mrf.mxu0
        %v399 = vpop.f32.mrf.mxu0
        %v400 = vadd.f32 0.0, %v399
        %v401 = vpop.f32.mrf.mxu0
        %402 = vmatprep.mubr.bf16.mxu0 0
        %403 = vmatmul.mubr.bf16.gmra.mxu0 %v340
        %v404 = vpop.f32.mrf.mxu0
        %v405 = vadd.f32 0.0, %v404
        %v406 = vpop.f32.mrf.mxu0
        %v407 = vpop.f32.mrf.mxu0
        %v408 = vadd.f32 0.0, %v407
        %v409 = vpop.f32.mrf.mxu0
        %410 = vdwg.mxu0
        %v411 = vmax.f32 %v381, 0.0
        %v412 = vmax.f32 %v384, 0.0
        %v413 = vmax.f32 %v389, 0.0
        %v414 = vmax.f32 %v392, 0.0
        %v415 = vmax.f32 %v397, 0.0
        %v416 = vmax.f32 %v400, 0.0
        %v417 = vmax.f32 %v405, 0.0
        %v418 = vmax.f32 %v408, 0.0
        %v419 = vpack.c.bf16 %v412, %v411
        %v420 = vpack.c.bf16 %v414, %v413
        %v421 = vpack.c.bf16 %v416, %v415
        %v422 = vpack.c.bf16 %v418, %v417
        %v423 = vld [vmem:[%s2] sm:$0xf]
        %v424 = vld [vmem:[%s2 + $0x4] sm:$0xf]
        %v425 = vld [vmem:[%s2 + $0x8] sm:$0xf]
        %v426 = vld [vmem:[%s2 + $0xc] sm:$0xf]
        %s427 = scalar_lea.vmem %s2, 16
        %v428 = vld [vmem:[%s427] sm:$0xf]
        %v429 = vld [vmem:[%s427 + $0x4] sm:$0xf]
        %v430 = vld [vmem:[%s427 + $0x8] sm:$0xf]
        %v431 = vld [vmem:[%s427 + $0xc] sm:$0xf]
        %v436 = vunpack.c.l.b16 %v428
        %v437 = vunpack.c.l.b16 %v429
        %v438 = vunpack.c.l.b16 %v430
        %v439 = vunpack.c.l.b16 %v431
        %v440 = vpack.c.b16 %v437, %v436
        %v441 = vpack.c.b16 %v439, %v438
        %vm444 = vcmask 261120
        %v446 = vsel %vm444, %v420, 0
        %v449 = vsel %vm444, %v422, 0
        %451 = vmatprep.subr.bf16.mxu0 0
        %452 = vmatpush1.bf16.msra.mxu0 0
        %453 = vmatprep.subr.bf16.mxu0 0
        %454 = vmatpush1.bf16.msra.mxu0 0
        %455 = vmatprep.subr.bf16.mxu0 0
        %456 = vmatpush1.bf16.msra.mxu0 0
        %457 = vmatprep.subr.bf16.mxu0 0
        %458 = vmatpush1.bf16.msra.mxu0 0
        %459 = vmatprep.subr.bf16.mxu0 0
        %460 = vmatpush1.bf16.msra.mxu0 0
        %461 = vmatprep.subr.bf16.mxu0 0
        %462 = vmatpush1.bf16.msra.mxu0 0
        %463 = vmatprep.subr.bf16.mxu0 0
        %464 = vmatpush1.bf16.msra.mxu0 %v441
        %465 = vmatprep.subr.bf16.mxu0 0
        %466 = vmatpush1.bf16.msra.mxu0 %v440
        %467 = vmatprep.subr.bf16.mxu0 0
        %468 = vmatpush2.bf16.msra.mxu0 0
        %469 = vmatprep.subr.bf16.mxu0 0
        %470 = vmatpush2.bf16.msra.mxu0 0
        %471 = vmatprep.subr.bf16.mxu0 0
        %472 = vmatpush2.bf16.msra.mxu0 0
        %473 = vmatprep.subr.bf16.mxu0 0
        %474 = vmatpush2.bf16.msra.mxu0 0
        %475 = vmatprep.subr.bf16.mxu0 0
        %476 = vmatpush2.bf16.msra.mxu0 0
        %477 = vmatprep.subr.bf16.mxu0 0
        %478 = vmatpush2.bf16.msra.mxu0 0
        %479 = vmatprep.subr.bf16.mxu0 0
        %480 = vmatpush2.bf16.msra.mxu0 0
        %481 = vmatprep.subr.bf16.mxu0 0
        %482 = vmatpush2.bf16.msra.mxu0 0
        %483 = vmatprep.mubr.bf16.mxu0 0
        %484 = vmatmul.mubr.bf16.gmra.mxu0 %v446
        %v485 = vpop.f32.mrf.mxu0
        %v486 = vadd.f32 0.0, %v485
        %v487 = vpop.f32.mrf.mxu0
        %v488 = vpop.f32.mrf.mxu0
        %v489 = vadd.f32 0.0, %v488
        %v490 = vpop.f32.mrf.mxu0
        %491 = vmatprep.mubr.bf16.mxu0 0
        %492 = vmatmul.mubr.bf16.gmra.mxu0 %v449
        %v493 = vpop.f32.mrf.mxu0
        %v494 = vadd.f32 0.0, %v493
        %v495 = vpop.f32.mrf.mxu0
        %v496 = vpop.f32.mrf.mxu0
        %v497 = vadd.f32 0.0, %v496
        %v498 = vpop.f32.mrf.mxu0
        %499 = vdwg.mxu0
        %v504 = vunpack.c.l.b16 %v423
        %v505 = vunpack.c.l.b16 %v424
        %v506 = vunpack.c.l.b16 %v425
        %v507 = vunpack.c.l.b16 %v426
        %v508 = vpack.c.b16 %v505, %v504
        %v509 = vpack.c.b16 %v507, %v506
        %v513 = vsel %vm444, %v419, 0
        %v516 = vsel %vm444, %v421, 0
        %518 = vmatprep.subr.bf16.mxu0 0
        %519 = vmatpush1.bf16.msra.mxu0 0
        %520 = vmatprep.subr.bf16.mxu0 0
        %521 = vmatpush1.bf16.msra.mxu0 0
        %522 = vmatprep.subr.bf16.mxu0 0
        %523 = vmatpush1.bf16.msra.mxu0 0
        %524 = vmatprep.subr.bf16.mxu0 0
        %525 = vmatpush1.bf16.msra.mxu0 0
        %526 = vmatprep.subr.bf16.mxu0 0
        %527 = vmatpush1.bf16.msra.mxu0 0
        %528 = vmatprep.subr.bf16.mxu0 0
        %529 = vmatpush1.bf16.msra.mxu0 0
        %530 = vmatprep.subr.bf16.mxu0 0
        %531 = vmatpush1.bf16.msra.mxu0 %v509
        %532 = vmatprep.subr.bf16.mxu0 0
        %533 = vmatpush1.bf16.msra.mxu0 %v508
        %534 = vmatprep.subr.bf16.mxu0 0
        %535 = vmatpush2.bf16.msra.mxu0 0
        %536 = vmatprep.subr.bf16.mxu0 0
        %537 = vmatpush2.bf16.msra.mxu0 0
        %538 = vmatprep.subr.bf16.mxu0 0
        %539 = vmatpush2.bf16.msra.mxu0 0
        %540 = vmatprep.subr.bf16.mxu0 0
        %541 = vmatpush2.bf16.msra.mxu0 0
        %542 = vmatprep.subr.bf16.mxu0 0
        %543 = vmatpush2.bf16.msra.mxu0 0
        %544 = vmatprep.subr.bf16.mxu0 0
        %545 = vmatpush2.bf16.msra.mxu0 0
        %546 = vmatprep.subr.bf16.mxu0 0
        %547 = vmatpush2.bf16.msra.mxu0 0
        %548 = vmatprep.subr.bf16.mxu0 0
        %549 = vmatpush2.bf16.msra.mxu0 0
        %550 = vmatprep.mubr.bf16.mxu0 0
        %551 = vmatmul.mubr.bf16.gmra.mxu0 %v513
        %v552 = vpop.f32.mrf.mxu0
        %v553 = vadd.f32 %v486, %v552
        %v554 = vpop.f32.mrf.mxu0
        %v555 = vpop.f32.mrf.mxu0
        %v556 = vadd.f32 %v489, %v555
        %v557 = vpop.f32.mrf.mxu0
        %558 = vmatprep.mubr.bf16.mxu0 0
        %559 = vmatmul.mubr.bf16.gmra.mxu0 %v516
        %v560 = vpop.f32.mrf.mxu0
        %v561 = vadd.f32 %v494, %v560
        %v562 = vpop.f32.mrf.mxu0
        %v563 = vpop.f32.mrf.mxu0
        %v564 = vadd.f32 %v497, %v563
        %v565 = vpop.f32.mrf.mxu0
        %566 = vdwg.mxu0
        %v567 = vmax.f32 %v553, 0.0
        %v568 = vmax.f32 %v556, 0.0
        %v569 = vmax.f32 %v561, 0.0
        %v570 = vmax.f32 %v564, 0.0
        %v571 = vpack.c.bf16 %v568, %v567
        %v572 = vpack.c.bf16 %v570, %v569
        %v573 = vld [vmem:[%s3] sm:$0xf]
        %v574 = vld [vmem:[%s3 + $0x4] sm:$0xf]
        %v575 = vld [vmem:[%s3 + $0x8] sm:$0xf]
        %v576 = vld [vmem:[%s3 + $0xc] sm:$0xf]
        %s577 = scalar_lea.vmem %s3, 16
        %v578 = vld [vmem:[%s577] sm:$0xf]
        %v579 = vld [vmem:[%s577 + $0x4] sm:$0xf]
        %v580 = vld [vmem:[%s577 + $0x8] sm:$0xf]
        %v581 = vld [vmem:[%s577 + $0xc] sm:$0xf]
        %v586 = vunpack.c.l.b16 %v578
        %v587 = vunpack.c.l.b16 %v579
        %v588 = vunpack.c.l.b16 %v580
        %v589 = vunpack.c.l.b16 %v581
        %v590 = vpack.c.b16 %v587, %v586
        %v591 = vpack.c.b16 %v589, %v588
        %v595 = vsel %vm444, %v572, 0
        %597 = vmatprep.subr.bf16.mxu0 0
        %598 = vmatpush1.bf16.msra.mxu0 0
        %599 = vmatprep.subr.bf16.mxu0 0
        %600 = vmatpush1.bf16.msra.mxu0 0
        %601 = vmatprep.subr.bf16.mxu0 0
        %602 = vmatpush1.bf16.msra.mxu0 0
        %603 = vmatprep.subr.bf16.mxu0 0
        %604 = vmatpush1.bf16.msra.mxu0 0
        %605 = vmatprep.subr.bf16.mxu0 0
        %606 = vmatpush1.bf16.msra.mxu0 0
        %607 = vmatprep.subr.bf16.mxu0 0
        %608 = vmatpush1.bf16.msra.mxu0 0
        %609 = vmatprep.subr.bf16.mxu0 0
        %610 = vmatpush1.bf16.msra.mxu0 %v591
        %611 = vmatprep.subr.bf16.mxu0 0
        %612 = vmatpush1.bf16.msra.mxu0 %v590
        %613 = vmatprep.subr.bf16.mxu0 0
        %614 = vmatpush2.bf16.msra.mxu0 0
        %615 = vmatprep.subr.bf16.mxu0 0
        %616 = vmatpush2.bf16.msra.mxu0 0
        %617 = vmatprep.subr.bf16.mxu0 0
        %618 = vmatpush2.bf16.msra.mxu0 0
        %619 = vmatprep.subr.bf16.mxu0 0
        %620 = vmatpush2.bf16.msra.mxu0 0
        %621 = vmatprep.subr.bf16.mxu0 0
        %622 = vmatpush2.bf16.msra.mxu0 0
        %623 = vmatprep.subr.bf16.mxu0 0
        %624 = vmatpush2.bf16.msra.mxu0 0
        %625 = vmatprep.subr.bf16.mxu0 0
        %626 = vmatpush2.bf16.msra.mxu0 0
        %627 = vmatprep.subr.bf16.mxu0 0
        %628 = vmatpush2.bf16.msra.mxu0 0
        %629 = vmatprep.mubr.bf16.mxu0 0
        %630 = vmatmul.mubr.bf16.gmra.mxu0 %v595
        %v631 = vpop.f32.mrf.mxu0
        %v632 = vadd.f32 0.0, %v631
        %v633 = vpop.f32.mrf.mxu0
        %v634 = vpop.f32.mrf.mxu0
        %v635 = vadd.f32 0.0, %v634
        %v636 = vpop.f32.mrf.mxu0
        %637 = vdwg.mxu0
        %v642 = vunpack.c.l.b16 %v573
        %v643 = vunpack.c.l.b16 %v574
        %v644 = vunpack.c.l.b16 %v575
        %v645 = vunpack.c.l.b16 %v576
        %v646 = vpack.c.b16 %v643, %v642
        %v647 = vpack.c.b16 %v645, %v644
        %v651 = vsel %vm444, %v571, 0
        %653 = vmatprep.subr.bf16.mxu0 0
        %654 = vmatpush1.bf16.msra.mxu0 0
        %655 = vmatprep.subr.bf16.mxu0 0
        %656 = vmatpush1.bf16.msra.mxu0 0
        %657 = vmatprep.subr.bf16.mxu0 0
        %658 = vmatpush1.bf16.msra.mxu0 0
        %659 = vmatprep.subr.bf16.mxu0 0
        %660 = vmatpush1.bf16.msra.mxu0 0
        %661 = vmatprep.subr.bf16.mxu0 0
        %662 = vmatpush1.bf16.msra.mxu0 0
        %663 = vmatprep.subr.bf16.mxu0 0
        %664 = vmatpush1.bf16.msra.mxu0 0
        %665 = vmatprep.subr.bf16.mxu0 0
        %666 = vmatpush1.bf16.msra.mxu0 %v647
        %667 = vmatprep.subr.bf16.mxu0 0
        %668 = vmatpush1.bf16.msra.mxu0 %v646
        %669 = vmatprep.subr.bf16.mxu0 0
        %670 = vmatpush2.bf16.msra.mxu0 0
        %671 = vmatprep.subr.bf16.mxu0 0
        %672 = vmatpush2.bf16.msra.mxu0 0
        %673 = vmatprep.subr.bf16.mxu0 0
        %674 = vmatpush2.bf16.msra.mxu0 0
        %675 = vmatprep.subr.bf16.mxu0 0
        %676 = vmatpush2.bf16.msra.mxu0 0
        %677 = vmatprep.subr.bf16.mxu0 0
        %678 = vmatpush2.bf16.msra.mxu0 0
        %679 = vmatprep.subr.bf16.mxu0 0
        %680 = vmatpush2.bf16.msra.mxu0 0
        %681 = vmatprep.subr.bf16.mxu0 0
        %682 = vmatpush2.bf16.msra.mxu0 0
        %683 = vmatprep.subr.bf16.mxu0 0
        %684 = vmatpush2.bf16.msra.mxu0 0
        %685 = vmatprep.mubr.bf16.mxu0 0
        %686 = vmatmul.mubr.bf16.gmra.mxu0 %v651
        %v687 = vpop.f32.mrf.mxu0
        %v688 = vadd.f32 %v632, %v687
        %v689 = vpop.f32.mrf.mxu0
        %v690 = vpop.f32.mrf.mxu0
        %v691 = vadd.f32 %v635, %v690
        %v692 = vpop.f32.mrf.mxu0
        %693 = vdwg.mxu0
        %v694 = vmax.f32 %v688, 0.0
        %v695 = vmax.f32 %v691, 0.0
        %v696 = vpack.c.bf16 %v695, %v694
        %v697 = vld [vmem:[%s4] sm:$0xf]
        %v698 = vld [vmem:[%s4 + $0x4] sm:$0xf]
        %v699 = vld [vmem:[%s4 + $0x8] sm:$0xf]
        %v700 = vld [vmem:[%s4 + $0xc] sm:$0xf]
        %v705 = vunpack.c.l.b16 %v697
        %v706 = vunpack.c.l.b16 %v698
        %v707 = vunpack.c.l.b16 %v699
        %v708 = vunpack.c.l.b16 %v700
        %v709 = vpack.c.b16 %v706, %v705
        %v710 = vpack.c.b16 %v708, %v707
        %v714 = vsel %vm444, %v696, 0
        %716 = vmatprep.subr.bf16.mxu0 0
        %717 = vmatpush1.bf16.msra.mxu0 0
        %718 = vmatprep.subr.bf16.mxu0 0
        %719 = vmatpush1.bf16.msra.mxu0 0
        %720 = vmatprep.subr.bf16.mxu0 0
        %721 = vmatpush1.bf16.msra.mxu0 0
        %722 = vmatprep.subr.bf16.mxu0 0
        %723 = vmatpush1.bf16.msra.mxu0 0
        %724 = vmatprep.subr.bf16.mxu0 0
        %725 = vmatpush1.bf16.msra.mxu0 0
        %726 = vmatprep.subr.bf16.mxu0 0
        %727 = vmatpush1.bf16.msra.mxu0 0
        %728 = vmatprep.subr.bf16.mxu0 0
        %729 = vmatpush1.bf16.msra.mxu0 %v710
        %730 = vmatprep.subr.bf16.mxu0 0
        %731 = vmatpush1.bf16.msra.mxu0 %v709
        %732 = vmatprep.subr.bf16.mxu0 0
        %733 = vmatpush2.bf16.msra.mxu0 0
        %734 = vmatprep.subr.bf16.mxu0 0
        %735 = vmatpush2.bf16.msra.mxu0 0
        %736 = vmatprep.subr.bf16.mxu0 0
        %737 = vmatpush2.bf16.msra.mxu0 0
        %738 = vmatprep.subr.bf16.mxu0 0
        %739 = vmatpush2.bf16.msra.mxu0 0
        %740 = vmatprep.subr.bf16.mxu0 0
        %741 = vmatpush2.bf16.msra.mxu0 0
        %742 = vmatprep.subr.bf16.mxu0 0
        %743 = vmatpush2.bf16.msra.mxu0 0
        %744 = vmatprep.subr.bf16.mxu0 0
        %745 = vmatpush2.bf16.msra.mxu0 0
        %746 = vmatprep.subr.bf16.mxu0 0
        %747 = vmatpush2.bf16.msra.mxu0 0
        %748 = vmatprep.mubr.bf16.mxu0 0
        %749 = vmatmul.mubr.bf16.gmra.mxu0 %v714
        %v750 = vpop.f32.mrf.mxu0
        %v751 = vadd.f32 0.0, %v750
        %v752 = vpop.f32.mrf.mxu0
        %v753 = vpop.f32.mrf.mxu0
        %v754 = vadd.f32 0.0, %v753
        %v755 = vpop.f32.mrf.mxu0
        %756 = vdwg.mxu0
        %757 = vst.msk [vmem:[%s297] sm:$0xff] %vm329, %v751
        %758 = vst.msk [vmem:[%s297 + $0x8] sm:$0xff] %vm329, %v754
        %s759 = smul.u32 2, %s16
        %p760 = scmp.lt.s32.totalorder %s759, 3
        %s761 = scalar_select %p760, %s759, 3
        %s762 = smul.addr %s761, 8
        %s763 = scalar_lea.vmem %s5, %s762
        // Predicated region
        $region82: #{cnn_forward.1} parent=76 // pred_check
          %p764 = pneg %p144
        $region83: #{cnn_forward.1} parent=76 // pred_check_branch
          %766 = sbr.rel (%p764) target = $region85
        $region84: #{cnn_forward.1} parent=76 // pred_region
          %s767 = smul.u32 2, %s16
        $region85: #{cnn_forward.1} parent=76 // pred_fallthru
          _
      $region77: #{cnn_forward.1} parent=5 // pred_fallthru
        _
      %p768 = scmp.le.s32.totalorder 2, %s11
      // Predicated region
      $region86: #{cnn_forward.1} parent=5 // pred_check
        %p769 = pneg %p768
      $region87: #{cnn_forward.1} parent=5 // pred_check_branch
        %771 = sbr.rel (%p769) target = $region89
      $region88: #{cnn_forward.1} parent=5 // pred_region
        %s772 = ssub.s32 %s11, 2
        // Predicated region
        $region90: #{cnn_forward.1} parent=88 // pred_check
          %p773 = pneg %p150
        $region91: #{cnn_forward.1} parent=88 // pred_check_branch
          %775 = sbr.rel (%p773) target = $region93
        $region92: #{cnn_forward.1} parent=88 // pred_region
          %s776 = smul.u32 2, %s17
          %p777 = scmp.lt.s32.totalorder %s776, 3
          %s778 = scalar_select %p777, %s776, 3
          %s779 = smul.addr %s778, 8
          %s780 = scalar_lea.vmem %s5, %s779
        $region93: #{cnn_forward.1} parent=88 // pred_fallthru
          _
      $region89: #{cnn_forward.1} parent=5 // pred_fallthru
        _
    $region6: #{cnn_forward.1} parent=1 // loop_footer
      %s15 = sadd.s32 1, %s11
    $region7: #{cnn_forward.1} parent=1 // loop_footer_branch
      %10 = sbr.rel target = $region3
    $region8: #{cnn_forward.1} parent=1 // loop_exit
      _

</llo_original>
